<compile_context>
chip_gen: v6e
topology: v6e:2x2x1
jax: 0.10.0
libtpu: 0.0.40
codegen_flags: <defaults>
</compile_context>

<pallas_src>
import jax
import jax.numpy as jnp
from jax import lax
from jax.experimental import pallas as pl
from jax.experimental.pallas import tpu as pltpu

BN_EPS = 1e-5
ROW_TILE_TARGET = 8                    # rows per spatial tile (use 32-64 for 224x224 inputs)
VMEM_LIMIT_BYTES = 48 * 1024 * 1024    # above default scoped limits, below v7x 64 MiB physical

# Original config from the PyTorch script (kept for reference; the demo below
# instantiates the same VGG structure with reduced widths so it runs fast):
CHANNELS = {'vgg': {'encoder': [64, 64, 'M', 128, 128, 'M', 256, 256, 256, 'M',
                                512, 512, 512, 'M', 512, 512, 512],
                    'decoder': [512, 256, 128, 64, 64]}}

_MXU_256 = None


def _mxu_is_256_wide():
    """v6e / v7x MXUs are 256 wide; v5e (and older) are 128 wide."""
    global _MXU_256
    if _MXU_256 is None:
        try:
            kind = jax.devices()[0].device_kind.lower()
            _MXU_256 = not any(v in kind for v in ('v2', 'v3', 'v4', 'v5'))
        except Exception:
            _MXU_256 = False
    return _MXU_256


def _pick_tco(cout):
    """Output-channel tile: 256 on v6e/v7x when divisible, else 128, else full Cout."""
    if cout % 256 == 0 and _mxu_is_256_wide():
        return 256
    if cout % 128 == 0:
        return 128
    # Small-channel layers (16/32/64): single block.  Lane-sparse stores for
    # C<128 are a known inefficiency (lane-dense repacking not applied here).
    return cout


def _row_tile(h, target=ROW_TILE_TARGET):
    """Largest divisor of h that is <= target."""
    t = max(1, min(h, target))
    while h % t:
        t -= 1
    return t


# ----------------------------------------------------------------------------
# Pass 1: Conv3x3 + bias on one (image, row tile, Cout block) + BN partial sums
# ----------------------------------------------------------------------------
def _conv_stats_kernel(x_ref, w_ref, b_ref, y_ref, stat_ref):
    """x_ref:    (1, TH+2, W+2, Cin)  f32  input row tile with +1 halo
       w_ref:    (3, 3*Cin, TCO)      bf16 weights, dw/Cin folded into matmul K
       b_ref:    (1, TCO)             f32  conv bias
       y_ref:    (1, TH, W, TCO)      f32  conv+bias output (pre-BN)
       stat_ref: (1, 2, TCO)          f32  per-tile (sum, sum of squares)
    """
    _, th, wd, tco = y_ref.shape
    cin = x_ref.shape[-1]
    x = x_ref[0]                                         # (TH+2, W+2, Cin)

    acc = jnp.zeros((th * wd, tco), jnp.float32)
    for dh in range(3):                                  # 3 MXU matmuls, K = 3*Cin
        rows = x[dh:dh + th]                             # (TH, W+2, Cin)
        patch = jnp.concatenate(
            [rows[:, 0:wd, :], rows[:, 1:wd + 1, :], rows[:, 2:wd + 2, :]],
            axis=-1)                                     # (TH, W, 3*Cin) im2col over dw
        patch = patch.reshape(th * wd, 3 * cin).astype(jnp.bfloat16)
        acc = acc + jnp.dot(patch, w_ref[dh],
                            preferred_element_type=jnp.float32)
    acc = acc + b_ref[...]                               # broadcast (1, TCO)

    y_ref[...] = acc.reshape(1, th, wd, tco)
    ssum = jnp.sum(acc, axis=0, keepdims=True)           # (1, TCO)
    ssq = jnp.sum(acc * acc, axis=0, keepdims=True)      # (1, TCO)
    stat_ref[0] = jnp.concatenate([ssum, ssq], axis=0)   # (2, TCO)


# ----------------------------------------------------------------------------
# Pass 2: BN affine + ReLU (optionally fused with MaxPool2d(2, 2))
# TODO(synk): MaxPool2d(return_indices=True) argmax indices are stored on
# self._indices in the PyTorch module and never returned by forward(); they are
# not materialized here.
# ----------------------------------------------------------------------------
def _bn_relu_kernel(y_ref, scale_ref, shift_ref, o_ref):
    s = scale_ref[...].reshape(1, 1, 1, -1)
    t = shift_ref[...].reshape(1, 1, 1, -1)
    o_ref[...] = jnp.maximum(y_ref[...] * s + t, 0.0)


def _bn_relu_pool_kernel(y_ref, scale_ref, shift_ref, o_ref):
    """y_ref: (1, 2*THo, W, TCO) -> o_ref: (1, THo, W//2, TCO).  Reads y once via
    four strided views; applies the BN affine + ReLU before the max."""
    _, tho, wo, _ = o_ref.shape
    s = scale_ref[...].reshape(1, 1, 1, -1)
    t = shift_ref[...].reshape(1, 1, 1, -1)

    def act(hp, wp):
        z = y_ref[:, pl.ds(hp, tho, stride=2), pl.ds(wp, wo, stride=2), :]
        return jnp.maximum(z * s + t, 0.0)

    o_ref[...] = jnp.maximum(jnp.maximum(act(0, 0), act(0, 1)),
                             jnp.maximum(act(1, 0), act(1, 1)))


# ----------------------------------------------------------------------------
# Layer wrapper
# ----------------------------------------------------------------------------
def conv_bn_relu(x_nhwc, p, fuse_pool):
    N, H, W, Cin = x_nhwc.shape
    w, b = p['w'], p['b']
    Cout = w.shape[-1]

    th = _row_tile(H)
    n_rt = H // th
    tco = _pick_tco(Cout)
    n_ct = Cout // tco

    # Overlapping row windows carrying the +1 halo (one wrapper-side copy,
    # comparable cost to the plain per-layer pad it replaces, but it lets the
    # conv pass stream row tiles with ordinary BlockSpec double-buffering).
    x_pad = jnp.pad(x_nhwc, ((0, 0), (1, 1), (1, 1), (0, 0)))
    x_halo = jnp.stack([x_pad[:, r * th:r * th + th + 2] for r in range(n_rt)],
                       axis=1).reshape(N * n_rt, th + 2, W + 2, Cin)

    y, stats = pl.pallas_call(
        _conv_stats_kernel,
        out_shape=(jax.ShapeDtypeStruct((N, H, W, Cout), jnp.float32),
                   jax.ShapeDtypeStruct((N * n_rt, 2, Cout), jnp.float32)),
        grid=(N, n_rt, n_ct),
        in_specs=[
            pl.BlockSpec((1, th + 2, W + 2, Cin),
                         lambda bi, ri, ci: (bi * n_rt + ri, 0, 0, 0)),
            pl.BlockSpec((3, 3 * Cin, tco), lambda bi, ri, ci: (0, 0, ci)),
            pl.BlockSpec((1, tco), lambda bi, ri, ci: (0, ci)),
        ],
        out_specs=(
            pl.BlockSpec((1, th, W, tco), lambda bi, ri, ci: (bi, ri, 0, ci)),
            pl.BlockSpec((1, 2, tco), lambda bi, ri, ci: (bi * n_rt + ri, 0, ci)),
        ),
        compiler_params=pltpu.CompilerParams(
            dimension_semantics=("parallel", "parallel", "arbitrary"),
            vmem_limit_bytes=VMEM_LIMIT_BYTES),
    )(x_halo, w, b)

    # BatchNorm2d training-mode statistics over (N, H, W) (tiny per-channel glue).
    s = jnp.sum(stats, axis=0)                           # (2, Cout)
    cnt = float(N * H * W)
    mean = s[0] / cnt
    var = jnp.maximum(s[1] / cnt - mean * mean, 0.0)     # biased variance
    inv = lax.rsqrt(var + BN_EPS)
    scale = (p['gamma'][0] * inv)[None, :]               # (1, Cout)
    shift = (p['beta'][0] - mean * p['gamma'][0] * inv)[None, :]

    if not fuse_pool:
        return pl.pallas_call(
            _bn_relu_kernel,
            out_shape=jax.ShapeDtypeStruct((N, H, W, Cout), jnp.float32),
            grid=(N, n_rt, n_ct),
            in_specs=[
                pl.BlockSpec((1, th, W, tco), lambda bi, ri, ci: (bi, ri, 0, ci)),
                pl.BlockSpec((1, tco), lambda bi, ri, ci: (0, ci)),
                pl.BlockSpec((1, tco), lambda bi, ri, ci: (0, ci)),
            ],
            out_specs=pl.BlockSpec((1, th, W, tco),
                                   lambda bi, ri, ci: (bi, ri, 0, ci)),
            compiler_params=pltpu.CompilerParams(
                dimension_semantics=("parallel", "parallel", "parallel"),
                vmem_limit_bytes=VMEM_LIMIT_BYTES),
        )(y, scale, shift)

    Ho, Wo = H // 2, W // 2
    tho = _row_tile(Ho)
    n_rto = Ho // tho
    return pl.pallas_call(
        _bn_relu_pool_kernel,
        out_shape=jax.ShapeDtypeStruct((N, Ho, Wo, Cout), jnp.float32),
        grid=(N, n_rto, n_ct),
        in_specs=[
            pl.BlockSpec((1, 2 * tho, W, tco), lambda bi, ri, ci: (bi, ri, 0, ci)),
            pl.BlockSpec((1, tco), lambda bi, ri, ci: (0, ci)),
            pl.BlockSpec((1, tco), lambda bi, ri, ci: (0, ci)),
        ],
        out_specs=pl.BlockSpec((1, tho, Wo, tco),
                               lambda bi, ri, ci: (bi, ri, 0, ci)),
        compiler_params=pltpu.CompilerParams(
            dimension_semantics=("parallel", "parallel", "parallel"),
            vmem_limit_bytes=VMEM_LIMIT_BYTES),
    )(y, scale, shift)


# ----------------------------------------------------------------------------
# VGG encoder: params + forward
# ----------------------------------------------------------------------------
def init_params(key, encoder_channels, in_channel):
    params = []
    cin = in_channel
    for v in encoder_channels:
        if v == 'M':
            params.append(None)
            continue
        key, kw, kb = jax.random.split(key, 3)
        bound = (1.0 / (cin * 9)) ** 0.5
        w = jax.random.uniform(kw, (3, 3, cin, v), jnp.float32, -bound, bound)
        b = jax.random.uniform(kb, (1, v), jnp.float32, -bound, bound)
        params.append({
            # (3, 3*Cin, Cout): [dh, dw*Cin + ci, co]; bf16 operands, f32 MXU accumulate.
            'w': w.reshape(3, 3 * cin, v).astype(jnp.bfloat16),
            'b': b,                                    # (1, Cout) f32
            'gamma': jnp.ones((1, v), jnp.float32),    # fresh BatchNorm2d: weight=1
            'beta': jnp.zeros((1, v), jnp.float32),    # fresh BatchNorm2d: bias=0
        })
        cin = v
    return params


def vgg_forward(params, encoder_channels, x_nchw):
    x = jnp.transpose(x_nchw, (0, 2, 3, 1))   # NCHW -> NHWC (glue)
    i = 0
    n = len(encoder_channels)
    while i < n:
        if encoder_channels[i] == 'M':
            # TODO(synk): standalone MaxPool2d (an 'M' not preceded by a conv) never
            # occurs in the VGG configs; the pool is fused into the previous conv layer.
            raise NotImplementedError("standalone 'M' layer")
        fuse_pool = (i + 1 < n and encoder_channels[i + 1] == 'M')
        x = conv_bn_relu(x, params[i], fuse_pool)
        i += 2 if fuse_pool else 1
    return jnp.transpose(x, (0, 3, 1, 2))     # NHWC -> NCHW


# Pure-JAX reference (same math: bf16 conv operands, f32 accumulation/BN).
def _ref_forward(params, encoder_channels, x_nchw):
    x = jnp.transpose(x_nchw, (0, 2, 3, 1))
    for v, p in zip(encoder_channels, params):
        if v == 'M':
            x = lax.reduce_window(x, -jnp.inf, lax.max,
                                  (1, 2, 2, 1), (1, 2, 2, 1), 'VALID')
        else:
            cout = p['w'].shape[-1]
            cin = p['w'].shape[1] // 3
            w_hwio = p['w'].reshape(3, 3, cin, cout)      # bf16
            y = lax.conv_general_dilated(
                x.astype(jnp.bfloat16), w_hwio, (1, 1), 'SAME',
                dimension_numbers=('NHWC', 'HWIO', 'NHWC'),
                preferred_element_type=jnp.float32) + p['b'][0]
            mean = jnp.mean(y, axis=(0, 1, 2), keepdims=True)
            var = jnp.mean((y - mean) ** 2, axis=(0, 1, 2), keepdims=True)
            y = (y - mean) * lax.rsqrt(var + BN_EPS) * p['gamma'][0] + p['beta'][0]
            x = jnp.maximum(y, 0.0)
    return jnp.transpose(x, (0, 3, 1, 2))


if __name__ == "__main__":
    # Small instantiation of the VGG encoder structure (conv-conv-M blocks); the
    # same code handles the full CHANNELS['vgg']['encoder'] config.
    encoder_channels = [16, 16, 'M', 32, 32, 'M', 64, 64, 64]
    in_channel = 4

    root = jax.random.PRNGKey(0)
    kx, kp = jax.random.split(root)
    x = jax.random.normal(kx, (2, in_channel, 16, 16), dtype=jnp.float32)
    params = init_params(kp, encoder_channels, in_channel)

    out = vgg_forward(params, encoder_channels, x)
    out = jax.block_until_ready(out)
    assert out.shape == (2, 64, 4, 4), out.shape

    ref = _ref_forward(params, encoder_channels, x)
    err = float(jnp.max(jnp.abs(out - ref)))
    assert jnp.allclose(out, ref, atol=2e-2, rtol=2e-2), f"max abs err {err}"

    print("KERNEL_OK")
</pallas_src>

<mosaic_0001>
module attributes {stable_mosaic.version = 11 : i64} {
  func.func @_conv_stats_kernel(%arg0: i32, %arg1: i32, %arg2: i32, %arg3: memref<1x10x18x4xf32, #tpu.memory_space<vmem>>, %arg4: memref<3x12x16xbf16, #tpu.memory_space<vmem>>, %arg5: memref<1x16xf32, #tpu.memory_space<vmem>>, %arg6: memref<1x8x16x16xf32, #tpu.memory_space<vmem>>, %arg7: memref<1x2x16xf32, #tpu.memory_space<vmem>>) attributes {dimension_semantics = [#tpu.dimension_semantics<parallel>, #tpu.dimension_semantics<parallel>, #tpu.dimension_semantics<arbitrary>], iteration_bounds = array<i64: 2, 2, 1>, scalar_prefetch = 0 : i64, scratch_operands = 0 : i64, tpu.core_type = #tpu.core_type<tc>, window_params = [{transform_indices = @transform_0, window_bounds = array<i64: 1, 10, 18, 4>}, {transform_indices = @transform_1, window_bounds = array<i64: 3, 12, 16>}, {transform_indices = @transform_2, window_bounds = array<i64: 1, 16>}, {transform_indices = @transform_3, window_bounds = array<i64: 1, 8, 16, 16>}, {transform_indices = @transform_4, window_bounds = array<i64: 1, 2, 16>}]} {
    %c0 = arith.constant 0 : index
    %c0_0 = arith.constant 0 : index
    %c0_1 = arith.constant 0 : index
    %c0_2 = arith.constant 0 : index
    %0 = vector.load %arg3[%c0, %c0_0, %c0_1, %c0_2] : memref<1x10x18x4xf32, #tpu.memory_space<vmem>>, vector<1x10x18x4xf32>
    %1 = vector.shape_cast %0 : vector<1x10x18x4xf32> to vector<10x18x4xf32>
    %cst = arith.constant 0.000000e+00 : f32
    %2 = vector.broadcast %cst : f32 to vector<128x16xf32>
    %3 = vector.extract_strided_slice %1 {offsets = [0, 0, 0], sizes = [8, 18, 4], strides = [1, 1, 1]} : vector<10x18x4xf32> to vector<8x18x4xf32>
    %4 = vector.extract_strided_slice %3 {offsets = [0, 0, 0], sizes = [8, 16, 4], strides = [1, 1, 1]} : vector<8x18x4xf32> to vector<8x16x4xf32>
    %5 = vector.extract_strided_slice %3 {offsets = [0, 1, 0], sizes = [8, 16, 4], strides = [1, 1, 1]} : vector<8x18x4xf32> to vector<8x16x4xf32>
    %6 = vector.extract_strided_slice %3 {offsets = [0, 2, 0], sizes = [8, 16, 4], strides = [1, 1, 1]} : vector<8x18x4xf32> to vector<8x16x4xf32>
    %7 = tpu.concatenate %4, %5, %6 in 2 : vector<8x16x4xf32>, vector<8x16x4xf32>, vector<8x16x4xf32> -> vector<8x16x12xf32>
    %8 = vector.shape_cast %7 : vector<8x16x12xf32> to vector<128x12xf32>
    %9 = arith.truncf %8 : vector<128x12xf32> to vector<128x12xbf16>
    %c0_3 = arith.constant 0 : index
    %c0_4 = arith.constant 0 : index
    %c0_5 = arith.constant 0 : index
    %10 = vector.load %arg4[%c0_3, %c0_4, %c0_5] : memref<3x12x16xbf16, #tpu.memory_space<vmem>>, vector<1x12x16xbf16>
    %11 = vector.shape_cast %10 : vector<1x12x16xbf16> to vector<12x16xbf16>
    %cst_6 = arith.constant dense<0.000000e+00> : vector<128x16xf32>
    %12 = tpu.matmul %9, %11, %cst_6 {dimension_numbers = #tpu.dot_dimension_numbers<[1], [0], [0], [1], [0, 0, 1, 1], [], []>} : vector<128x12xbf16>, vector<12x16xbf16>, vector<128x16xf32> -> vector<128x16xf32>
    %13 = arith.addf %2, %12 : vector<128x16xf32>
    %14 = vector.extract_strided_slice %1 {offsets = [1, 0, 0], sizes = [8, 18, 4], strides = [1, 1, 1]} : vector<10x18x4xf32> to vector<8x18x4xf32>
    %15 = vector.extract_strided_slice %14 {offsets = [0, 0, 0], sizes = [8, 16, 4], strides = [1, 1, 1]} : vector<8x18x4xf32> to vector<8x16x4xf32>
    %16 = vector.extract_strided_slice %14 {offsets = [0, 1, 0], sizes = [8, 16, 4], strides = [1, 1, 1]} : vector<8x18x4xf32> to vector<8x16x4xf32>
    %17 = vector.extract_strided_slice %14 {offsets = [0, 2, 0], sizes = [8, 16, 4], strides = [1, 1, 1]} : vector<8x18x4xf32> to vector<8x16x4xf32>
    %18 = tpu.concatenate %15, %16, %17 in 2 : vector<8x16x4xf32>, vector<8x16x4xf32>, vector<8x16x4xf32> -> vector<8x16x12xf32>
    %19 = vector.shape_cast %18 : vector<8x16x12xf32> to vector<128x12xf32>
    %20 = arith.truncf %19 : vector<128x12xf32> to vector<128x12xbf16>
    %c1 = arith.constant 1 : index
    %c0_7 = arith.constant 0 : index
    %c0_8 = arith.constant 0 : index
    %21 = vector.load %arg4[%c1, %c0_7, %c0_8] : memref<3x12x16xbf16, #tpu.memory_space<vmem>>, vector<1x12x16xbf16>
    %22 = vector.shape_cast %21 : vector<1x12x16xbf16> to vector<12x16xbf16>
    %cst_9 = arith.constant dense<0.000000e+00> : vector<128x16xf32>
    %23 = tpu.matmul %20, %22, %cst_9 {dimension_numbers = #tpu.dot_dimension_numbers<[1], [0], [0], [1], [0, 0, 1, 1], [], []>} : vector<128x12xbf16>, vector<12x16xbf16>, vector<128x16xf32> -> vector<128x16xf32>
    %24 = arith.addf %13, %23 : vector<128x16xf32>
    %25 = vector.extract_strided_slice %1 {offsets = [2, 0, 0], sizes = [8, 18, 4], strides = [1, 1, 1]} : vector<10x18x4xf32> to vector<8x18x4xf32>
    %26 = vector.extract_strided_slice %25 {offsets = [0, 0, 0], sizes = [8, 16, 4], strides = [1, 1, 1]} : vector<8x18x4xf32> to vector<8x16x4xf32>
    %27 = vector.extract_strided_slice %25 {offsets = [0, 1, 0], sizes = [8, 16, 4], strides = [1, 1, 1]} : vector<8x18x4xf32> to vector<8x16x4xf32>
    %28 = vector.extract_strided_slice %25 {offsets = [0, 2, 0], sizes = [8, 16, 4], strides = [1, 1, 1]} : vector<8x18x4xf32> to vector<8x16x4xf32>
    %29 = tpu.concatenate %26, %27, %28 in 2 : vector<8x16x4xf32>, vector<8x16x4xf32>, vector<8x16x4xf32> -> vector<8x16x12xf32>
    %30 = vector.shape_cast %29 : vector<8x16x12xf32> to vector<128x12xf32>
    %31 = arith.truncf %30 : vector<128x12xf32> to vector<128x12xbf16>
    %c2 = arith.constant 2 : index
    %c0_10 = arith.constant 0 : index
    %c0_11 = arith.constant 0 : index
    %32 = vector.load %arg4[%c2, %c0_10, %c0_11] : memref<3x12x16xbf16, #tpu.memory_space<vmem>>, vector<1x12x16xbf16>
    %33 = vector.shape_cast %32 : vector<1x12x16xbf16> to vector<12x16xbf16>
    %cst_12 = arith.constant dense<0.000000e+00> : vector<128x16xf32>
    %34 = tpu.matmul %31, %33, %cst_12 {dimension_numbers = #tpu.dot_dimension_numbers<[1], [0], [0], [1], [0, 0, 1, 1], [], []>} : vector<128x12xbf16>, vector<12x16xbf16>, vector<128x16xf32> -> vector<128x16xf32>
    %35 = arith.addf %24, %34 : vector<128x16xf32>
    %c0_13 = arith.constant 0 : index
    %c0_14 = arith.constant 0 : index
    %36 = vector.load %arg5[%c0_13, %c0_14] : memref<1x16xf32, #tpu.memory_space<vmem>>, vector<1x16xf32>
    %37 = vector.broadcast %36 : vector<1x16xf32> to vector<128x16xf32>
    %38 = arith.addf %35, %37 : vector<128x16xf32>
    %39 = vector.shape_cast %38 : vector<128x16xf32> to vector<1x8x16x16xf32>
    %c0_15 = arith.constant 0 : index
    %c0_16 = arith.constant 0 : index
    %c0_17 = arith.constant 0 : index
    %c0_18 = arith.constant 0 : index
    %40 = vector.load %arg6[%c0_15, %c0_16, %c0_17, %c0_18] : memref<1x8x16x16xf32, #tpu.memory_space<vmem>>, vector<1x8x16x16xf32>
    tpu.vector_store %arg6[%c0_15, %c0_16, %c0_17, %c0_18], %39 {strides = array<i32>} : memref<1x8x16x16xf32, #tpu.memory_space<vmem>>, vector<1x8x16x16xf32>,
    %cst_19 = arith.constant dense<0.000000e+00> : vector<16xf32>
    %41 = vector.multi_reduction <add>, %38, %cst_19 [0] : vector<128x16xf32> to vector<16xf32>
    %42 = vector.shape_cast %41 : vector<16xf32> to vector<1x16xf32>
    %43 = arith.mulf %38, %38 : vector<128x16xf32>
    %cst_20 = arith.constant dense<0.000000e+00> : vector<16xf32>
    %44 = vector.multi_reduction <add>, %43, %cst_20 [0] : vector<128x16xf32> to vector<16xf32>
    %45 = vector.shape_cast %44 : vector<16xf32> to vector<1x16xf32>
    %46 = tpu.concatenate %42, %45 in 0 : vector<1x16xf32>, vector<1x16xf32> -> vector<2x16xf32>
    %c0_21 = arith.constant 0 : index
    %c0_22 = arith.constant 0 : index
    %c0_23 = arith.constant 0 : index
    %47 = vector.load %arg7[%c0_21, %c0_22, %c0_23] : memref<1x2x16xf32, #tpu.memory_space<vmem>>, vector<1x2x16xf32>
    %48 = vector.shape_cast %47 : vector<1x2x16xf32> to vector<2x16xf32>
    %49 = vector.shape_cast %46 : vector<2x16xf32> to vector<1x2x16xf32>
    tpu.vector_store %arg7[%c0_21, %c0_22, %c0_23], %49 {strides = array<i32>} : memref<1x2x16xf32, #tpu.memory_space<vmem>>, vector<1x2x16xf32>,
    return
  }
  func.func @transform_0(%arg0: i32, %arg1: i32, %arg2: i32) -> (i32, i32, i32, i32) {
    %c2_i32 = arith.constant 2 : i32
    %0 = arith.muli %arg0, %c2_i32 : i32
    %1 = arith.addi %0, %arg1 : i32
    %c0_i32 = arith.constant 0 : i32
    %c0_i32_0 = arith.constant 0 : i32
    %c0_i32_1 = arith.constant 0 : i32
    %c0_i32_2 = arith.constant 0 : i32
    return %1, %c0_i32, %c0_i32_0, %c0_i32_1 : i32, i32, i32, i32
  }
  func.func @transform_1(%arg0: i32, %arg1: i32, %arg2: i32) -> (i32, i32, i32) {
    %c0_i32 = arith.constant 0 : i32
    %c0_i32_0 = arith.constant 0 : i32
    %c0_i32_1 = arith.constant 0 : i32
    return %c0_i32, %c0_i32_0, %arg2 : i32, i32, i32
  }
  func.func @transform_2(%arg0: i32, %arg1: i32, %arg2: i32) -> (i32, i32) {
    %c0_i32 = arith.constant 0 : i32
    %c0_i32_0 = arith.constant 0 : i32
    return %c0_i32, %arg2 : i32, i32
  }
  func.func @transform_3(%arg0: i32, %arg1: i32, %arg2: i32) -> (i32, i32, i32, i32) {
    %c0_i32 = arith.constant 0 : i32
    %c0_i32_0 = arith.constant 0 : i32
    return %arg0, %arg1, %c0_i32, %arg2 : i32, i32, i32, i32
  }
  func.func @transform_4(%arg0: i32, %arg1: i32, %arg2: i32) -> (i32, i32, i32) {
    %c2_i32 = arith.constant 2 : i32
    %0 = arith.muli %arg0, %c2_i32 : i32
    %1 = arith.addi %0, %arg1 : i32
    %c0_i32 = arith.constant 0 : i32
    %c0_i32_0 = arith.constant 0 : i32
    return %1, %c0_i32, %arg2 : i32, i32, i32
  }
}

</mosaic_0001>

<llo_original>
// kernel: tpu_custom_call.1
$region0: #{tpu_custom_call.1}
  #allocation0 [shape = 'u32[]', space=smem, size = 0x4, offset = 0x4, fixed_abs, tag = 'smem constant byte address 0x4 - core index']
  #allocation1 [shape = 'u32[144,128]{1,0:T(1,128)}', space=vmem, size = 0x12000, scoped, tag = 'internal scratch']
  %s0 = inlined_call_operand.vmem [shape: f32[4,10,18,4], index: 0, kind: input, shape index: {}]
  %s1 = inlined_call_operand.vmem [shape: bf16[3,12,16], index: 1, kind: input, shape index: {}]
  %s2 = inlined_call_operand.vmem [shape: f32[1,16], index: 2, kind: input, shape index: {}]
  %s3 = inlined_call_operand.hbm [shape: f32[2,16,16,16], index: 3, kind: output, shape index: {0}]
  %s4 = inlined_call_operand.hbm [shape: f32[4,2,16], index: 4, kind: output, shape index: {1}]
  %5 = xla_tuple %s3, %s4
  %s6 = sld [smem:[#allocation0]]
  $region53: #{tpu_custom_call.1} parent=0
    _
  %s8 = ssub.s32 1, %s6
  %s9 = scalar_select 0, %s8, %s6
  $region1: #{tpu_custom_call.1} parent=0
    #allocation2 [shape = 'u8[131072]{0}', space=vmem, size = 0x20000, scoped, tag = 'output window, operand 0']
    #allocation3 [shape = 's32[2]{0}', space=sflag, size = 0x8, scoped, tag = 'scoped memory for tpu_custom_call.1']
    #allocation4 [shape = 'u8[2048]{0}', space=vmem, size = 0x800, scoped, tag = 'output window, operand 1']
    #allocation5 [shape = 's32[2]{0}', space=sflag, size = 0x8, scoped, tag = 'scoped memory for tpu_custom_call.1']
    %10 = vsyncpa [#allocation3], 0
    %s11 = scalar_lea.sflag [#allocation3], 1
    %12 = vsyncpa %s11, 0
    %13 = vsyncpa [#allocation5], 0
    %s14 = scalar_lea.sflag [#allocation5], 1
    %15 = vsyncpa %s14, 0
    loop: start=0, step=1, limit=6
    $region2: #{tpu_custom_call.1} parent=1 // loop_pre_header
      _
    $region3: #{tpu_custom_call.1} parent=1 // loop_header
      %s17 = sphi 0, %s21
      %p18 = scmp.ge.s32.totalorder %s17, 6
      %s24 = sphi 0, %s43
      %s25 = sphi 0, %s39
      %s26 = sphi 0, %s35
      %s27 = sphi 0, %s24
      %s28 = sphi 0, %s25
      %s29 = sphi 0, %s26
      %s30 = sphi 0, %s27
      %s31 = sphi 0, %s28
      %s32 = sphi 0, %s29
      %s50 = sphi 0, %s52
      %s53 = sphi 0, %s50
      %s54 = sphi 0, %s53
      %s70 = sphi 0, %s54
      %s76 = sphi 0, %s78
      %s79 = sphi 0, %s76
      %s80 = sphi 0, %s79
      %s96 = sphi 0, %s80
      %s102 = sphi 0, %s104
      %s105 = sphi 0, %s102
      %s106 = sphi 0, %s105
      %s122 = sphi 0, %s106
      %s132 = sphi 0, %s134
      %s135 = sphi 0, %s132
      %s136 = sphi 0, %s135
      %s152 = sphi 0, %s136
      %s164 = sphi 0, %s166
      %s167 = sphi 0, %s164
      %s168 = sphi 0, %s167
      %s184 = sphi 0, %s168
    $region4: #{tpu_custom_call.1} parent=1 // loop_header_branch
      %20 = sbr.rel (%p18) target = $region8
    $region5: #{tpu_custom_call.1} parent=1 // loop_body
      %s22 = ssub.s32 %s17, 1
      %s23 = ssub.s32 %s17, 2
      %s33 = sadd.s32 1, %s26
      %p34 = scmp.ge.s32.totalorder %s33, 1
      %s35 = scalar_select %p34, 0, %s33
      %s36 = sadd.s32 1, %s25
      %s37 = scalar_select %p34, %s36, %s25
      %p38 = scmp.ge.s32.totalorder %s37, 2
      %s39 = scalar_select %p38, 0, %s37
      %s40 = sadd.s32 1, %s24
      %s41 = scalar_select %p38, %s40, %s24
      %p42 = scmp.ge.s32.totalorder %s41, 2
      %s43 = scalar_select %p42, 0, %s41
      %s44 = smul.u32 %s24, 2
      %s45 = sadd.s32 %s44, %s25
      %s46 = smul.u32 %s43, 2
      %s47 = sadd.s32 %s46, %s39
      %s48 = ssub.s32 %s45, %s47
      %p49 = scmp.eq.s32.totalorder %s48, 0
      %s51 = sadd.s32 %s50, 1
      %s52 = scalar_select %p49, %s50, %s51
      %p55 = pneg %p49
      %p56 = scmp.eq.s32.totalorder %s17, 3
      %p57 = por %p55, %p56
      %p58 = scmp.ne.s32.totalorder %s50, %s53
      %p59 = scmp.eq.s32.totalorder %s17, 0
      %p60 = por %p58, %p59
      %p61 = scmp.ne.s32.totalorder %s50, %s53
      %p62 = scmp.eq.s32.totalorder %s22, 3
      %p63 = por %p61, %p62
      %p64 = scmp.ne.s32.totalorder %s53, %s54
      %p65 = scmp.eq.s32.totalorder %s22, 0
      %p66 = por %p64, %p65
      %p67 = scmp.ne.s32.totalorder %s53, %s54
      %p68 = scmp.eq.s32.totalorder %s23, 3
      %p69 = por %p67, %p68
      %p71 = scmp.ne.s32.totalorder %s54, %s70
      %p72 = scmp.eq.s32.totalorder %s23, 0
      %p73 = por %p71, %p72
      %s74 = ssub.s32 %s26, %s35
      %p75 = scmp.eq.s32.totalorder %s74, 0
      %s77 = sadd.s32 %s76, 1
      %s78 = scalar_select %p75, %s76, %s77
      %p81 = pneg %p75
      %p82 = scmp.eq.s32.totalorder %s17, 3
      %p83 = por %p81, %p82
      %p84 = scmp.ne.s32.totalorder %s76, %s79
      %p85 = scmp.eq.s32.totalorder %s17, 0
      %p86 = por %p84, %p85
      %p87 = scmp.ne.s32.totalorder %s76, %s79
      %p88 = scmp.eq.s32.totalorder %s22, 3
      %p89 = por %p87, %p88
      %p90 = scmp.ne.s32.totalorder %s79, %s80
      %p91 = scmp.eq.s32.totalorder %s22, 0
      %p92 = por %p90, %p91
      %p93 = scmp.ne.s32.totalorder %s79, %s80
      %p94 = scmp.eq.s32.totalorder %s23, 3
      %p95 = por %p93, %p94
      %p97 = scmp.ne.s32.totalorder %s80, %s96
      %p98 = scmp.eq.s32.totalorder %s23, 0
      %p99 = por %p97, %p98
      %s100 = ssub.s32 %s26, %s35
      %p101 = scmp.eq.s32.totalorder %s100, 0
      %s103 = sadd.s32 %s102, 1
      %s104 = scalar_select %p101, %s102, %s103
      %p107 = pneg %p101
      %p108 = scmp.eq.s32.totalorder %s17, 3
      %p109 = por %p107, %p108
      %p110 = scmp.ne.s32.totalorder %s102, %s105
      %p111 = scmp.eq.s32.totalorder %s17, 0
      %p112 = por %p110, %p111
      %p113 = scmp.ne.s32.totalorder %s102, %s105
      %p114 = scmp.eq.s32.totalorder %s22, 3
      %p115 = por %p113, %p114
      %p116 = scmp.ne.s32.totalorder %s105, %s106
      %p117 = scmp.eq.s32.totalorder %s22, 0
      %p118 = por %p116, %p117
      %p119 = scmp.ne.s32.totalorder %s105, %s106
      %p120 = scmp.eq.s32.totalorder %s23, 3
      %p121 = por %p119, %p120
      %p123 = scmp.ne.s32.totalorder %s106, %s122
      %p124 = scmp.eq.s32.totalorder %s23, 0
      %p125 = por %p123, %p124
      %s126 = ssub.s32 %s24, %s43
      %s127 = ssub.s32 %s25, %s39
      %s128 = sor.u32 %s126, %s127
      %s129 = ssub.s32 %s26, %s35
      %s130 = sor.u32 %s128, %s129
      %p131 = scmp.eq.s32.totalorder %s130, 0
      %s133 = sadd.s32 %s132, 1
      %s134 = scalar_select %p131, %s132, %s133
      %p137 = pneg %p131
      %p138 = scmp.eq.s32.totalorder %s17, 3
      %p139 = por %p137, %p138
      %p140 = scmp.ne.s32.totalorder %s132, %s135
      %p141 = scmp.eq.s32.totalorder %s17, 0
      %p142 = por %p140, %p141
      %p143 = scmp.ne.s32.totalorder %s132, %s135
      %p144 = scmp.eq.s32.totalorder %s22, 3
      %p145 = por %p143, %p144
      %p146 = scmp.ne.s32.totalorder %s135, %s136
      %p147 = scmp.eq.s32.totalorder %s22, 0
      %p148 = por %p146, %p147
      %p149 = scmp.ne.s32.totalorder %s135, %s136
      %p150 = scmp.eq.s32.totalorder %s23, 3
      %p151 = por %p149, %p150
      %p153 = scmp.ne.s32.totalorder %s136, %s152
      %p154 = scmp.eq.s32.totalorder %s23, 0
      %p155 = por %p153, %p154
      %s156 = smul.u32 %s24, 2
      %s157 = sadd.s32 %s156, %s25
      %s158 = smul.u32 %s43, 2
      %s159 = sadd.s32 %s158, %s39
      %s160 = ssub.s32 %s157, %s159
      %s161 = ssub.s32 %s26, %s35
      %s162 = sor.u32 %s160, %s161
      %p163 = scmp.eq.s32.totalorder %s162, 0
      %s165 = sadd.s32 %s164, 1
      %s166 = scalar_select %p163, %s164, %s165
      %p169 = pneg %p163
      %p170 = scmp.eq.s32.totalorder %s17, 3
      %p171 = por %p169, %p170
      %p172 = scmp.ne.s32.totalorder %s164, %s167
      %p173 = scmp.eq.s32.totalorder %s17, 0
      %p174 = por %p172, %p173
      %p175 = scmp.ne.s32.totalorder %s164, %s167
      %p176 = scmp.eq.s32.totalorder %s22, 3
      %p177 = por %p175, %p176
      %p178 = scmp.ne.s32.totalorder %s167, %s168
      %p179 = scmp.eq.s32.totalorder %s22, 0
      %p180 = por %p178, %p179
      %p181 = scmp.ne.s32.totalorder %s167, %s168
      %p182 = scmp.eq.s32.totalorder %s23, 3
      %p183 = por %p181, %p182
      %p185 = scmp.ne.s32.totalorder %s168, %s184
      %p186 = scmp.eq.s32.totalorder %s23, 0
      %p187 = por %p185, %p186
      %p188 = scmp.le.s32.totalorder 1, %s17
      %p189 = scmp.lt.s32.totalorder %s17, 5
      %p190 = pnand %p188, %p189
      %p191 = pneg %p190
      // Predicated region
      $region9: #{tpu_custom_call.1} parent=5 // pred_check
        _
      $region10: #{tpu_custom_call.1} parent=5 // pred_check_branch
        %193 = sbr.rel (%p190) target = $region12
      $region11: #{tpu_custom_call.1} parent=5 // pred_region
        %s194 = ssub.s32 %s17, 1
        // Predicated region
        $region13: #{tpu_custom_call.1} parent=11 // pred_check
          %p195 = pneg %p92
        $region14: #{tpu_custom_call.1} parent=11 // pred_check_branch
          %197 = sbr.rel (%p195) target = $region16
        $region15: #{tpu_custom_call.1} parent=11 // pred_region
          %p198 = scmp.lt.s32.totalorder %s29, 0
          %s199 = scalar_select %p198, %s29, 0
          %s200 = smul.addr %s199, 4
          %s201 = scalar_lea.vmem %s1, %s200
        $region16: #{tpu_custom_call.1} parent=11 // pred_fallthru
          _
        // Predicated region
        $region17: #{tpu_custom_call.1} parent=11 // pred_check
          %p202 = pneg %p118
        $region18: #{tpu_custom_call.1} parent=11 // pred_check_branch
          %204 = sbr.rel (%p202) target = $region20
        $region19: #{tpu_custom_call.1} parent=11 // pred_region
          %p205 = scmp.lt.s32.totalorder %s29, 0
          %s206 = scalar_select %p205, %s29, 0
          %s207 = scalar_lea.vmem %s2, %s206
        $region20: #{tpu_custom_call.1} parent=11 // pred_fallthru
          _
      $region12: #{tpu_custom_call.1} parent=5 // pred_fallthru
        _
      %p208 = scmp.lt.s32.totalorder %s17, 4
      // Predicated region
      $region21: #{tpu_custom_call.1} parent=5 // pred_check
        %p209 = pneg %p208
      $region22: #{tpu_custom_call.1} parent=5 // pred_check_branch
        %211 = sbr.rel (%p209) target = $region24
      $region23: #{tpu_custom_call.1} parent=5 // pred_region
        // Predicated region
        $region25: #{tpu_custom_call.1} parent=23 // pred_check
          %p212 = pneg %p60
        $region26: #{tpu_custom_call.1} parent=23 // pred_check_branch
          %214 = sbr.rel (%p212) target = $region28
        $region27: #{tpu_custom_call.1} parent=23 // pred_region
          %s215 = smul.u32 %s24, 2
          %s216 = sadd.s32 %s215, %s25
          %p217 = scmp.lt.s32.totalorder %s216, 3
          %s218 = scalar_select %p217, %s216, 3
          %s219 = smul.addr %s218, 30
          %s220 = smul.addr %s219, 8
          %s221 = scalar_lea.vmem %s0, %s220
          %s222 = smul.u32 %s24, 2
          %s223 = sadd.s32 %s222, %s25
        $region28: #{tpu_custom_call.1} parent=23 // pred_fallthru
          _
      $region24: #{tpu_custom_call.1} parent=5 // pred_fallthru
        _
      %p224 = scmp.le.s32.totalorder 1, %s17
      %p225 = scmp.lt.s32.totalorder %s17, 5
      %p226 = pnand %p224, %p225
      %p227 = pneg %p226
      // Predicated region
      $region29: #{tpu_custom_call.1} parent=5 // pred_check
        _
      $region30: #{tpu_custom_call.1} parent=5 // pred_check_branch
        %229 = sbr.rel (%p226) target = $region32
      $region31: #{tpu_custom_call.1} parent=5 // pred_region
        %s230 = ssub.s32 %s17, 1
        %s231 = smul.u32 %s27, 2
        %s232 = sadd.s32 %s231, %s28
        %p233 = scmp.lt.s32.totalorder %s232, 3
        %s234 = scalar_select %p233, %s232, 3
        %s235 = smul.addr %s234, 30
        %s236 = smul.addr %s235, 8
        %s237 = scalar_lea.vmem %s0, %s236
        %p238 = pneg %p66
        %p239 = pneg %p63
        %p240 = scmp.lt.s32.totalorder %s29, 0
        %s241 = scalar_select %p240, %s29, 0
        %s242 = smul.addr %s241, 4
        %s243 = scalar_lea.vmem %s1, %s242
        %p244 = pneg %p92
        %p245 = pneg %p89
        %p246 = scmp.lt.s32.totalorder %s29, 0
        %s247 = scalar_select %p246, %s29, 0
        %s248 = scalar_lea.vmem %s2, %s247
        %p249 = pneg %p118
        %p250 = pneg %p115
        %p251 = pneg %p148
        %p252 = pneg %p145
        %s253 = sand.u32 %s135, 1
        %s254 = scalar_lea.sflag [#allocation3], %s253
        %s255 = sand.u32 %s135, 1
        %s256 = smul.addr %s255, 128
        %s257 = scalar_lea.vmem [#allocation2], %s256
        %p258 = pneg %p180
        %p259 = pneg %p177
        %s260 = sand.u32 %s167, 1
        %s261 = scalar_lea.sflag [#allocation5], %s260
        %s262 = sand.u32 %s167, 1
        %s263 = smul.addr %s262, 2
        %s264 = scalar_lea.vmem [#allocation4], %s263
        %s265 = smul.u32 %s27, 2
        %s266 = sadd.s32 %s265, %s28
        %p267 = scmp.lt.s32.totalorder %s266, 3
        %s268 = scalar_select %p267, %s266, 3
        %s269 = smul.addr %s268, 30
        %s270 = smul.addr %s269, 8
        %s271 = scalar_lea.vmem %s0, %s270
        %s272 = smul.u32 %s27, 2
        %s273 = sadd.s32 %s272, %s28
        %p274 = scmp.lt.s32.totalorder %s29, 0
        %s275 = scalar_select %p274, %s29, 0
        %s276 = smul.addr %s275, 4
        %s277 = scalar_lea.vmem %s1, %s276
        %p278 = scmp.lt.s32.totalorder %s29, 0
        %s279 = scalar_select %p278, %s29, 0
        %s280 = scalar_lea.vmem %s2, %s279
        %s281 = smul.u32 8, %s28
        %s282 = smul.u32 %s27, 2
        %s283 = sadd.s32 %s282, %s28
        %v285 = vld [vmem:[%s271] sm:$0xff]
        %v286 = vld [vmem:[%s271 + $0x8] sm:$0xff]
        %v287 = vld [vmem:[%s271 + $0x10] sm:$0x3]
        %v288 = vld [vmem:[%s271 + $0x18] sm:$0xff]
        %v289 = vld [vmem:[%s271 + $0x20] sm:$0xff]
        %v290 = vld [vmem:[%s271 + $0x28] sm:$0x3]
        %v291 = vld [vmem:[%s271 + $0x30] sm:$0xff]
        %v292 = vld [vmem:[%s271 + $0x38] sm:$0xff]
        %v293 = vld [vmem:[%s271 + $0x40] sm:$0x3]
        %v294 = vld [vmem:[%s271 + $0x48] sm:$0xff]
        %v295 = vld [vmem:[%s271 + $0x50] sm:$0xff]
        %v296 = vld [vmem:[%s271 + $0x58] sm:$0x3]
        %v297 = vld [vmem:[%s271 + $0x60] sm:$0xff]
        %v298 = vld [vmem:[%s271 + $0x68] sm:$0xff]
        %v299 = vld [vmem:[%s271 + $0x70] sm:$0x3]
        %v300 = vld [vmem:[%s271 + $0x78] sm:$0xff]
        %v301 = vld [vmem:[%s271 + $0x80] sm:$0xff]
        %v302 = vld [vmem:[%s271 + $0x88] sm:$0x3]
        %v303 = vld [vmem:[%s271 + $0x90] sm:$0xff]
        %v304 = vld [vmem:[%s271 + $0x98] sm:$0xff]
        %v305 = vld [vmem:[%s271 + $0xa0] sm:$0x3]
        %v306 = vld [vmem:[%s271 + $0xa8] sm:$0xff]
        %v307 = vld [vmem:[%s271 + $0xb0] sm:$0xff]
        %v308 = vld [vmem:[%s271 + $0xb8] sm:$0x3]
        %v309 = vld [vmem:[%s271 + $0xc0] sm:$0xff]
        %v310 = vld [vmem:[%s271 + $0xc8] sm:$0xff]
        %v311 = vld [vmem:[%s271 + $0xd0] sm:$0x3]
        %v312 = vld [vmem:[%s271 + $0xd8] sm:$0xff]
        %v313 = vld [vmem:[%s271 + $0xe0] sm:$0xff]
        %v314 = vld [vmem:[%s271 + $0xe8] sm:$0x3]
        %vm339 = vcmask 1046528
        %v340 = vrot.slane %v285, 1
        %v341 = vrot.slane %v286, 1
        %v342 = vsel %vm339, %v340, %v341
        %v343 = vrot.slane %v287, 1
        %v344 = vsel %vm339, %v341, %v343
        %v345 = vrot.slane %v288, 1
        %v346 = vrot.slane %v289, 1
        %v347 = vsel %vm339, %v345, %v346
        %v348 = vrot.slane %v290, 1
        %v349 = vsel %vm339, %v346, %v348
        %v350 = vrot.slane %v291, 1
        %v351 = vrot.slane %v292, 1
        %v352 = vsel %vm339, %v350, %v351
        %v353 = vrot.slane %v293, 1
        %v354 = vsel %vm339, %v351, %v353
        %v355 = vrot.slane %v294, 1
        %v356 = vrot.slane %v295, 1
        %v357 = vsel %vm339, %v355, %v356
        %v358 = vrot.slane %v296, 1
        %v359 = vsel %vm339, %v356, %v358
        %v360 = vrot.slane %v297, 1
        %v361 = vrot.slane %v298, 1
        %v362 = vsel %vm339, %v360, %v361
        %v363 = vrot.slane %v299, 1
        %v364 = vsel %vm339, %v361, %v363
        %v365 = vrot.slane %v300, 1
        %v366 = vrot.slane %v301, 1
        %v367 = vsel %vm339, %v365, %v366
        %v368 = vrot.slane %v302, 1
        %v369 = vsel %vm339, %v366, %v368
        %v370 = vrot.slane %v303, 1
        %v371 = vrot.slane %v304, 1
        %v372 = vsel %vm339, %v370, %v371
        %v373 = vrot.slane %v305, 1
        %v374 = vsel %vm339, %v371, %v373
        %v375 = vrot.slane %v306, 1
        %v376 = vrot.slane %v307, 1
        %v377 = vsel %vm339, %v375, %v376
        %v378 = vrot.slane %v308, 1
        %v379 = vsel %vm339, %v376, %v378
        %380 = vrot.lane.b32.xlu0 %v342, 4
        %v381 = vpop.permute.xlu0 %380
        %382 = vrot.lane.b32.xlu0 %v344, 4
        %v383 = vpop.permute.xlu0 %382
        %384 = vrot.lane.b32.xlu0 %v347, 4
        %v385 = vpop.permute.xlu0 %384
        %386 = vrot.lane.b32.xlu0 %v349, 4
        %v387 = vpop.permute.xlu0 %386
        %388 = vrot.lane.b32.xlu0 %v352, 4
        %v389 = vpop.permute.xlu0 %388
        %390 = vrot.lane.b32.xlu0 %v354, 4
        %v391 = vpop.permute.xlu0 %390
        %392 = vrot.lane.b32.xlu0 %v357, 4
        %v393 = vpop.permute.xlu0 %392
        %394 = vrot.lane.b32.xlu0 %v359, 4
        %v395 = vpop.permute.xlu0 %394
        %396 = vrot.lane.b32.xlu0 %v362, 4
        %v397 = vpop.permute.xlu0 %396
        %398 = vrot.lane.b32.xlu0 %v364, 4
        %v399 = vpop.permute.xlu0 %398
        %400 = vrot.lane.b32.xlu0 %v367, 4
        %v401 = vpop.permute.xlu0 %400
        %402 = vrot.lane.b32.xlu0 %v369, 4
        %v403 = vpop.permute.xlu0 %402
        %404 = vrot.lane.b32.xlu0 %v372, 4
        %v405 = vpop.permute.xlu0 %404
        %406 = vrot.lane.b32.xlu0 %v374, 4
        %v407 = vpop.permute.xlu0 %406
        %408 = vrot.lane.b32.xlu0 %v377, 4
        %v409 = vpop.permute.xlu0 %408
        %410 = vrot.lane.b32.xlu0 %v379, 4
        %v411 = vpop.permute.xlu0 %410
        %vm428 = vcmask 1045504
        %v429 = vrot.slane %v285, 2
        %v430 = vrot.slane %v286, 2
        %v431 = vsel %vm428, %v429, %v430
        %v432 = vrot.slane %v287, 2
        %v433 = vsel %vm428, %v430, %v432
        %v434 = vrot.slane %v288, 2
        %v435 = vrot.slane %v289, 2
        %v436 = vsel %vm428, %v434, %v435
        %v437 = vrot.slane %v290, 2
        %v438 = vsel %vm428, %v435, %v437
        %v439 = vrot.slane %v291, 2
        %v440 = vrot.slane %v292, 2
        %v441 = vsel %vm428, %v439, %v440
        %v442 = vrot.slane %v293, 2
        %v443 = vsel %vm428, %v440, %v442
        %v444 = vrot.slane %v294, 2
        %v445 = vrot.slane %v295, 2
        %v446 = vsel %vm428, %v444, %v445
        %v447 = vrot.slane %v296, 2
        %v448 = vsel %vm428, %v445, %v447
        %v449 = vrot.slane %v297, 2
        %v450 = vrot.slane %v298, 2
        %v451 = vsel %vm428, %v449, %v450
        %v452 = vrot.slane %v299, 2
        %v453 = vsel %vm428, %v450, %v452
        %v454 = vrot.slane %v300, 2
        %v455 = vrot.slane %v301, 2
        %v456 = vsel %vm428, %v454, %v455
        %v457 = vrot.slane %v302, 2
        %v458 = vsel %vm428, %v455, %v457
        %v459 = vrot.slane %v303, 2
        %v460 = vrot.slane %v304, 2
        %v461 = vsel %vm428, %v459, %v460
        %v462 = vrot.slane %v305, 2
        %v463 = vsel %vm428, %v460, %v462
        %v464 = vrot.slane %v306, 2
        %v465 = vrot.slane %v307, 2
        %v466 = vsel %vm428, %v464, %v465
        %v467 = vrot.slane %v308, 2
        %v468 = vsel %vm428, %v465, %v467
        %469 = vrot.lane.b32.xlu0 %v431, 8
        %v470 = vpop.permute.xlu0 %469
        %471 = vrot.lane.b32.xlu0 %v433, 8
        %v472 = vpop.permute.xlu0 %471
        %473 = vrot.lane.b32.xlu0 %v436, 8
        %v474 = vpop.permute.xlu0 %473
        %475 = vrot.lane.b32.xlu0 %v438, 8
        %v476 = vpop.permute.xlu0 %475
        %477 = vrot.lane.b32.xlu0 %v441, 8
        %v478 = vpop.permute.xlu0 %477
        %479 = vrot.lane.b32.xlu0 %v443, 8
        %v480 = vpop.permute.xlu0 %479
        %481 = vrot.lane.b32.xlu0 %v446, 8
        %v482 = vpop.permute.xlu0 %481
        %483 = vrot.lane.b32.xlu0 %v448, 8
        %v484 = vpop.permute.xlu0 %483
        %485 = vrot.lane.b32.xlu0 %v451, 8
        %v486 = vpop.permute.xlu0 %485
        %487 = vrot.lane.b32.xlu0 %v453, 8
        %v488 = vpop.permute.xlu0 %487
        %489 = vrot.lane.b32.xlu0 %v456, 8
        %v490 = vpop.permute.xlu0 %489
        %491 = vrot.lane.b32.xlu0 %v458, 8
        %v492 = vpop.permute.xlu0 %491
        %493 = vrot.lane.b32.xlu0 %v461, 8
        %v494 = vpop.permute.xlu0 %493
        %495 = vrot.lane.b32.xlu0 %v463, 8
        %v496 = vpop.permute.xlu0 %495
        %497 = vrot.lane.b32.xlu0 %v466, 8
        %v498 = vpop.permute.xlu0 %497
        %499 = vrot.lane.b32.xlu0 %v468, 8
        %v500 = vpop.permute.xlu0 %499
        %vm517 = vcmask 31744
        %v518 = vsel %vm517, %v285, %v381
        %v519 = vsel %vm517, %v286, %v383
        %v520 = vsel %vm517, %v288, %v385
        %v521 = vsel %vm517, %v289, %v387
        %v522 = vsel %vm517, %v291, %v389
        %v523 = vsel %vm517, %v292, %v391
        %v524 = vsel %vm517, %v294, %v393
        %v525 = vsel %vm517, %v295, %v395
        %v526 = vsel %vm517, %v297, %v397
        %v527 = vsel %vm517, %v298, %v399
        %v528 = vsel %vm517, %v300, %v401
        %v529 = vsel %vm517, %v301, %v403
        %v530 = vsel %vm517, %v303, %v405
        %v531 = vsel %vm517, %v304, %v407
        %v532 = vsel %vm517, %v306, %v409
        %v533 = vsel %vm517, %v307, %v411
        %vm534 = vcmask 64512
        %v535 = vsel %vm534, %v518, %v470
        %v536 = vsel %vm534, %v519, %v472
        %v537 = vsel %vm534, %v520, %v474
        %v538 = vsel %vm534, %v521, %v476
        %v539 = vsel %vm534, %v522, %v478
        %v540 = vsel %vm534, %v523, %v480
        %v541 = vsel %vm534, %v524, %v482
        %v542 = vsel %vm534, %v525, %v484
        %v543 = vsel %vm534, %v526, %v486
        %v544 = vsel %vm534, %v527, %v488
        %v545 = vsel %vm534, %v528, %v490
        %v546 = vsel %vm534, %v529, %v492
        %v547 = vsel %vm534, %v530, %v494
        %v548 = vsel %vm534, %v531, %v496
        %v549 = vsel %vm534, %v532, %v498
        %v550 = vsel %vm534, %v533, %v500
        %v551 = vpack.c.bf16 %v536, %v535
        %v552 = vpack.c.bf16 %v538, %v537
        %v553 = vpack.c.bf16 %v540, %v539
        %v554 = vpack.c.bf16 %v542, %v541
        %v555 = vpack.c.bf16 %v544, %v543
        %v556 = vpack.c.bf16 %v546, %v545
        %v557 = vpack.c.bf16 %v548, %v547
        %v558 = vpack.c.bf16 %v550, %v549
        %v559 = vld [vmem:[%s277] sm:$0xf]
        %v560 = vld [vmem:[%s277 + $0x4] sm:$0x3]
        %v564 = vrot.slane %v309, 1
        %v565 = vrot.slane %v310, 1
        %v566 = vsel %vm339, %v564, %v565
        %v567 = vrot.slane %v311, 1
        %v568 = vsel %vm339, %v565, %v567
        %569 = vrot.lane.b32.xlu0 %v566, 4
        %v570 = vpop.permute.xlu0 %569
        %571 = vrot.lane.b32.xlu0 %v568, 4
        %v572 = vpop.permute.xlu0 %571
        %v575 = vrot.slane %v309, 2
        %v576 = vrot.slane %v310, 2
        %v577 = vsel %vm428, %v575, %v576
        %v578 = vrot.slane %v311, 2
        %v579 = vsel %vm428, %v576, %v578
        %580 = vrot.lane.b32.xlu0 %v577, 8
        %v581 = vpop.permute.xlu0 %580
        %582 = vrot.lane.b32.xlu0 %v579, 8
        %v583 = vpop.permute.xlu0 %582
        %v586 = vsel %vm517, %v309, %v570
        %v587 = vsel %vm517, %v310, %v572
        %v588 = vsel %vm534, %v586, %v581
        %v589 = vsel %vm534, %v587, %v583
        %v590 = vpack.c.bf16 %v589, %v588
        %s591 = scalar_lea.vmem %s277, 8
        %v592 = vld [vmem:[%s591] sm:$0xf]
        %v593 = vld [vmem:[%s591 + $0x4] sm:$0x3]
        %v596 = vunpack.c.l.b16 %v592
        %v597 = vunpack.c.l.b16 %v593
        %v598 = vpack.c.b16 %v597, %v596
        %vm599 = vcmask 97280
        %v601 = vsel %vm599, %v552, 0
        %v604 = vsel %vm599, %v553, 0
        %v607 = vsel %vm599, %v554, 0
        %v610 = vsel %vm599, %v555, 0
        %v613 = vsel %vm599, %v556, 0
        %v616 = vsel %vm599, %v557, 0
        %v619 = vsel %vm599, %v558, 0
        %v622 = vsel %vm599, %v590, 0
        %v625 = vsel %vm428, %v598, 0
        %627 = vmatprep.subr.bf16.mxu0 0
        %628 = vmatpush1.bf16.msra.mxu0 0
        %629 = vmatprep.subr.bf16.mxu0 0
        %630 = vmatpush1.bf16.msra.mxu0 0
        %631 = vmatprep.subr.bf16.mxu0 0
        %632 = vmatpush1.bf16.msra.mxu0 0
        %633 = vmatprep.subr.bf16.mxu0 0
        %634 = vmatpush1.bf16.msra.mxu0 0
        %635 = vmatprep.subr.bf16.mxu0 0
        %636 = vmatpush1.bf16.msra.mxu0 0
        %637 = vmatprep.subr.bf16.mxu0 0
        %638 = vmatpush1.bf16.msra.mxu0 0
        %639 = vmatprep.subr.bf16.mxu0 0
        %640 = vmatpush1.bf16.msra.mxu0 0
        %641 = vmatprep.subr.bf16.mxu0 0
        %642 = vmatpush1.bf16.msra.mxu0 %v625
        %643 = vmatprep.subr.bf16.mxu0 0
        %644 = vmatpush2.bf16.msra.mxu0 0
        %645 = vmatprep.subr.bf16.mxu0 0
        %646 = vmatpush2.bf16.msra.mxu0 0
        %647 = vmatprep.subr.bf16.mxu0 0
        %648 = vmatpush2.bf16.msra.mxu0 0
        %649 = vmatprep.subr.bf16.mxu0 0
        %650 = vmatpush2.bf16.msra.mxu0 0
        %651 = vmatprep.subr.bf16.mxu0 0
        %652 = vmatpush2.bf16.msra.mxu0 0
        %653 = vmatprep.subr.bf16.mxu0 0
        %654 = vmatpush2.bf16.msra.mxu0 0
        %655 = vmatprep.subr.bf16.mxu0 0
        %656 = vmatpush2.bf16.msra.mxu0 0
        %657 = vmatprep.subr.bf16.mxu0 0
        %658 = vmatpush2.bf16.msra.mxu0 0
        %659 = vmatprep.mubr.bf16.mxu0 0
        %660 = vmatmul.mubr.bf16.gmra.mxu0 %v601
        %v661 = vpop.f32.mrf.mxu0
        %v662 = vadd.f32 0.0, %v661
        %v663 = vpop.f32.mrf.mxu0
        %v664 = vpop.f32.mrf.mxu0
        %v665 = vadd.f32 0.0, %v664
        %v666 = vpop.f32.mrf.mxu0
        %667 = vmatprep.mubr.bf16.mxu0 0
        %668 = vmatmul.mubr.bf16.gmra.mxu0 %v604
        %v669 = vpop.f32.mrf.mxu0
        %v670 = vadd.f32 0.0, %v669
        %v671 = vpop.f32.mrf.mxu0
        %v672 = vpop.f32.mrf.mxu0
        %v673 = vadd.f32 0.0, %v672
        %v674 = vpop.f32.mrf.mxu0
        %675 = vmatprep.mubr.bf16.mxu0 0
        %676 = vmatmul.mubr.bf16.gmra.mxu0 %v607
        %v677 = vpop.f32.mrf.mxu0
        %v678 = vadd.f32 0.0, %v677
        %v679 = vpop.f32.mrf.mxu0
        %v680 = vpop.f32.mrf.mxu0
        %v681 = vadd.f32 0.0, %v680
        %v682 = vpop.f32.mrf.mxu0
        %683 = vmatprep.mubr.bf16.mxu0 0
        %684 = vmatmul.mubr.bf16.gmra.mxu0 %v610
        %v685 = vpop.f32.mrf.mxu0
        %v686 = vadd.f32 0.0, %v685
        %v687 = vpop.f32.mrf.mxu0
        %v688 = vpop.f32.mrf.mxu0
        %v689 = vadd.f32 0.0, %v688
        %v690 = vpop.f32.mrf.mxu0
        %691 = vmatprep.mubr.bf16.mxu0 0
        %692 = vmatmul.mubr.bf16.gmra.mxu0 %v613
        %v693 = vpop.f32.mrf.mxu0
        %v694 = vadd.f32 0.0, %v693
        %v695 = vpop.f32.mrf.mxu0
        %v696 = vpop.f32.mrf.mxu0
        %v697 = vadd.f32 0.0, %v696
        %v698 = vpop.f32.mrf.mxu0
        %699 = vmatprep.mubr.bf16.mxu0 0
        %700 = vmatmul.mubr.bf16.gmra.mxu0 %v616
        %v701 = vpop.f32.mrf.mxu0
        %v702 = vadd.f32 0.0, %v701
        %v703 = vpop.f32.mrf.mxu0
        %v704 = vpop.f32.mrf.mxu0
        %v705 = vadd.f32 0.0, %v704
        %v706 = vpop.f32.mrf.mxu0
        %707 = vmatprep.mubr.bf16.mxu0 0
        %708 = vmatmul.mubr.bf16.gmra.mxu0 %v619
        %v709 = vpop.f32.mrf.mxu0
        %v710 = vadd.f32 0.0, %v709
        %v711 = vpop.f32.mrf.mxu0
        %v712 = vpop.f32.mrf.mxu0
        %v713 = vadd.f32 0.0, %v712
        %v714 = vpop.f32.mrf.mxu0
        %715 = vmatprep.mubr.bf16.mxu0 0
        %716 = vmatmul.mubr.bf16.gmra.mxu0 %v622
        %v717 = vpop.f32.mrf.mxu0
        %v718 = vadd.f32 0.0, %v717
        %v719 = vpop.f32.mrf.mxu0
        %v720 = vpop.f32.mrf.mxu0
        %v721 = vadd.f32 0.0, %v720
        %v722 = vpop.f32.mrf.mxu0
        %723 = vdwg.mxu0
        %v726 = vunpack.c.l.b16 %v559
        %v727 = vunpack.c.l.b16 %v560
        %v728 = vpack.c.b16 %v727, %v726
        %v730 = vsel %vm599, %v551, 0
        %v733 = vsel %vm428, %v728, 0
        %735 = vmatprep.subr.bf16.mxu0 0
        %736 = vmatpush1.bf16.msra.mxu0 0
        %737 = vmatprep.subr.bf16.mxu0 0
        %738 = vmatpush1.bf16.msra.mxu0 0
        %739 = vmatprep.subr.bf16.mxu0 0
        %740 = vmatpush1.bf16.msra.mxu0 0
        %741 = vmatprep.subr.bf16.mxu0 0
        %742 = vmatpush1.bf16.msra.mxu0 0
        %743 = vmatprep.subr.bf16.mxu0 0
        %744 = vmatpush1.bf16.msra.mxu0 0
        %745 = vmatprep.subr.bf16.mxu0 0
        %746 = vmatpush1.bf16.msra.mxu0 0
        %747 = vmatprep.subr.bf16.mxu0 0
        %748 = vmatpush1.bf16.msra.mxu0 0
        %749 = vmatprep.subr.bf16.mxu0 0
        %750 = vmatpush1.bf16.msra.mxu0 %v733
        %751 = vmatprep.subr.bf16.mxu0 0
        %752 = vmatpush2.bf16.msra.mxu0 0
        %753 = vmatprep.subr.bf16.mxu0 0
        %754 = vmatpush2.bf16.msra.mxu0 0
        %755 = vmatprep.subr.bf16.mxu0 0
        %756 = vmatpush2.bf16.msra.mxu0 0
        %757 = vmatprep.subr.bf16.mxu0 0
        %758 = vmatpush2.bf16.msra.mxu0 0
        %759 = vmatprep.subr.bf16.mxu0 0
        %760 = vmatpush2.bf16.msra.mxu0 0
        %761 = vmatprep.subr.bf16.mxu0 0
        %762 = vmatpush2.bf16.msra.mxu0 0
        %763 = vmatprep.subr.bf16.mxu0 0
        %764 = vmatpush2.bf16.msra.mxu0 0
        %765 = vmatprep.subr.bf16.mxu0 0
        %766 = vmatpush2.bf16.msra.mxu0 0
        %767 = vmatprep.mubr.bf16.mxu0 0
        %768 = vmatmul.mubr.bf16.gmra.mxu0 %v730
        %v769 = vpop.f32.mrf.mxu0
        %v770 = vadd.f32 %v662, %v769
        %v771 = vpop.f32.mrf.mxu0
        %v772 = vpop.f32.mrf.mxu0
        %v773 = vadd.f32 %v665, %v772
        %v774 = vpop.f32.mrf.mxu0
        %775 = vmatprep.mubr.bf16.mxu0 0
        %776 = vmatmul.mubr.bf16.gmra.mxu0 %v601
        %v777 = vpop.f32.mrf.mxu0
        %v778 = vadd.f32 %v670, %v777
        %v779 = vpop.f32.mrf.mxu0
        %v780 = vpop.f32.mrf.mxu0
        %v781 = vadd.f32 %v673, %v780
        %v782 = vpop.f32.mrf.mxu0
        %783 = vmatprep.mubr.bf16.mxu0 0
        %784 = vmatmul.mubr.bf16.gmra.mxu0 %v604
        %v785 = vpop.f32.mrf.mxu0
        %v786 = vadd.f32 %v678, %v785
        %v787 = vpop.f32.mrf.mxu0
        %v788 = vpop.f32.mrf.mxu0
        %v789 = vadd.f32 %v681, %v788
        %v790 = vpop.f32.mrf.mxu0
        %791 = vmatprep.mubr.bf16.mxu0 0
        %792 = vmatmul.mubr.bf16.gmra.mxu0 %v607
        %v793 = vpop.f32.mrf.mxu0
        %v794 = vadd.f32 %v686, %v793
        %v795 = vpop.f32.mrf.mxu0
        %v796 = vpop.f32.mrf.mxu0
        %v797 = vadd.f32 %v689, %v796
        %v798 = vpop.f32.mrf.mxu0
        %799 = vmatprep.mubr.bf16.mxu0 0
        %800 = vmatmul.mubr.bf16.gmra.mxu0 %v610
        %v801 = vpop.f32.mrf.mxu0
        %v802 = vadd.f32 %v694, %v801
        %v803 = vpop.f32.mrf.mxu0
        %v804 = vpop.f32.mrf.mxu0
        %v805 = vadd.f32 %v697, %v804
        %v806 = vpop.f32.mrf.mxu0
        %807 = vmatprep.mubr.bf16.mxu0 0
        %808 = vmatmul.mubr.bf16.gmra.mxu0 %v613
        %v809 = vpop.f32.mrf.mxu0
        %v810 = vadd.f32 %v702, %v809
        %v811 = vpop.f32.mrf.mxu0
        %v812 = vpop.f32.mrf.mxu0
        %v813 = vadd.f32 %v705, %v812
        %v814 = vpop.f32.mrf.mxu0
        %815 = vmatprep.mubr.bf16.mxu0 0
        %816 = vmatmul.mubr.bf16.gmra.mxu0 %v616
        %v817 = vpop.f32.mrf.mxu0
        %v818 = vadd.f32 %v710, %v817
        %v819 = vpop.f32.mrf.mxu0
        %v820 = vpop.f32.mrf.mxu0
        %v821 = vadd.f32 %v713, %v820
        %v822 = vpop.f32.mrf.mxu0
        %823 = vmatprep.mubr.bf16.mxu0 0
        %824 = vmatmul.mubr.bf16.gmra.mxu0 %v619
        %v825 = vpop.f32.mrf.mxu0
        %v826 = vadd.f32 %v718, %v825
        %v827 = vpop.f32.mrf.mxu0
        %v828 = vpop.f32.mrf.mxu0
        %v829 = vadd.f32 %v721, %v828
        %v830 = vpop.f32.mrf.mxu0
        %831 = vdwg.mxu0
        %v835 = vrot.slane %v312, 1
        %v836 = vrot.slane %v313, 1
        %v837 = vsel %vm339, %v835, %v836
        %v838 = vrot.slane %v314, 1
        %v839 = vsel %vm339, %v836, %v838
        %840 = vrot.lane.b32.xlu0 %v837, 4
        %v841 = vpop.permute.xlu0 %840
        %842 = vrot.lane.b32.xlu0 %v839, 4
        %v843 = vpop.permute.xlu0 %842
        %v846 = vrot.slane %v312, 2
        %v847 = vrot.slane %v313, 2
        %v848 = vsel %vm428, %v846, %v847
        %v849 = vrot.slane %v314, 2
        %v850 = vsel %vm428, %v847, %v849
        %851 = vrot.lane.b32.xlu0 %v848, 8
        %v852 = vpop.permute.xlu0 %851
        %853 = vrot.lane.b32.xlu0 %v850, 8
        %v854 = vpop.permute.xlu0 %853
        %v857 = vsel %vm517, %v312, %v841
        %v858 = vsel %vm517, %v313, %v843
        %v859 = vsel %vm534, %v857, %v852
        %v860 = vsel %vm534, %v858, %v854
        %v861 = vpack.c.bf16 %v860, %v859
        %s862 = scalar_lea.vmem %s277, 16
        %v863 = vld [vmem:[%s862] sm:$0xf]
        %v864 = vld [vmem:[%s862 + $0x4] sm:$0x3]
        %v867 = vunpack.c.l.b16 %v863
        %v868 = vunpack.c.l.b16 %v864
        %v869 = vpack.c.b16 %v868, %v867
        %v871 = vsel %vm599, %v861, 0
        %v874 = vsel %vm428, %v869, 0
        %876 = vmatprep.subr.bf16.mxu0 0
        %877 = vmatpush1.bf16.msra.mxu0 0
        %878 = vmatprep.subr.bf16.mxu0 0
        %879 = vmatpush1.bf16.msra.mxu0 0
        %880 = vmatprep.subr.bf16.mxu0 0
        %881 = vmatpush1.bf16.msra.mxu0 0
        %882 = vmatprep.subr.bf16.mxu0 0
        %883 = vmatpush1.bf16.msra.mxu0 0
        %884 = vmatprep.subr.bf16.mxu0 0
        %885 = vmatpush1.bf16.msra.mxu0 0
        %886 = vmatprep.subr.bf16.mxu0 0
        %887 = vmatpush1.bf16.msra.mxu0 0
        %888 = vmatprep.subr.bf16.mxu0 0
        %889 = vmatpush1.bf16.msra.mxu0 0
        %890 = vmatprep.subr.bf16.mxu0 0
        %891 = vmatpush1.bf16.msra.mxu0 %v874
        %892 = vmatprep.subr.bf16.mxu0 0
        %893 = vmatpush2.bf16.msra.mxu0 0
        %894 = vmatprep.subr.bf16.mxu0 0
        %895 = vmatpush2.bf16.msra.mxu0 0
        %896 = vmatprep.subr.bf16.mxu0 0
        %897 = vmatpush2.bf16.msra.mxu0 0
        %898 = vmatprep.subr.bf16.mxu0 0
        %899 = vmatpush2.bf16.msra.mxu0 0
        %900 = vmatprep.subr.bf16.mxu0 0
        %901 = vmatpush2.bf16.msra.mxu0 0
        %902 = vmatprep.subr.bf16.mxu0 0
        %903 = vmatpush2.bf16.msra.mxu0 0
        %904 = vmatprep.subr.bf16.mxu0 0
        %905 = vmatpush2.bf16.msra.mxu0 0
        %906 = vmatprep.subr.bf16.mxu0 0
        %907 = vmatpush2.bf16.msra.mxu0 0
        %908 = vmatprep.mubr.bf16.mxu0 0
        %909 = vmatmul.mubr.bf16.gmra.mxu0 %v604
        %v910 = vpop.f32.mrf.mxu0
        %v911 = vadd.f32 0.0, %v910
        %v912 = vpop.f32.mrf.mxu0
        %v913 = vpop.f32.mrf.mxu0
        %v914 = vadd.f32 0.0, %v913
        %v915 = vpop.f32.mrf.mxu0
        %916 = vmatprep.mubr.bf16.mxu0 0
        %917 = vmatmul.mubr.bf16.gmra.mxu0 %v607
        %v918 = vpop.f32.mrf.mxu0
        %v919 = vadd.f32 0.0, %v918
        %v920 = vpop.f32.mrf.mxu0
        %v921 = vpop.f32.mrf.mxu0
        %v922 = vadd.f32 0.0, %v921
        %v923 = vpop.f32.mrf.mxu0
        %924 = vmatprep.mubr.bf16.mxu0 0
        %925 = vmatmul.mubr.bf16.gmra.mxu0 %v610
        %v926 = vpop.f32.mrf.mxu0
        %v927 = vadd.f32 0.0, %v926
        %v928 = vpop.f32.mrf.mxu0
        %v929 = vpop.f32.mrf.mxu0
        %v930 = vadd.f32 0.0, %v929
        %v931 = vpop.f32.mrf.mxu0
        %932 = vmatprep.mubr.bf16.mxu0 0
        %933 = vmatmul.mubr.bf16.gmra.mxu0 %v613
        %v934 = vpop.f32.mrf.mxu0
        %v935 = vadd.f32 0.0, %v934
        %v936 = vpop.f32.mrf.mxu0
        %v937 = vpop.f32.mrf.mxu0
        %v938 = vadd.f32 0.0, %v937
        %v939 = vpop.f32.mrf.mxu0
        %940 = vmatprep.mubr.bf16.mxu0 0
        %941 = vmatmul.mubr.bf16.gmra.mxu0 %v616
        %v942 = vpop.f32.mrf.mxu0
        %v943 = vadd.f32 0.0, %v942
        %v944 = vpop.f32.mrf.mxu0
        %v945 = vpop.f32.mrf.mxu0
        %v946 = vadd.f32 0.0, %v945
        %v947 = vpop.f32.mrf.mxu0
        %948 = vmatprep.mubr.bf16.mxu0 0
        %949 = vmatmul.mubr.bf16.gmra.mxu0 %v619
        %v950 = vpop.f32.mrf.mxu0
        %v951 = vadd.f32 0.0, %v950
        %v952 = vpop.f32.mrf.mxu0
        %v953 = vpop.f32.mrf.mxu0
        %v954 = vadd.f32 0.0, %v953
        %v955 = vpop.f32.mrf.mxu0
        %956 = vmatprep.mubr.bf16.mxu0 0
        %957 = vmatmul.mubr.bf16.gmra.mxu0 %v622
        %v958 = vpop.f32.mrf.mxu0
        %v959 = vadd.f32 0.0, %v958
        %v960 = vpop.f32.mrf.mxu0
        %v961 = vpop.f32.mrf.mxu0
        %v962 = vadd.f32 0.0, %v961
        %v963 = vpop.f32.mrf.mxu0
        %964 = vmatprep.mubr.bf16.mxu0 0
        %965 = vmatmul.mubr.bf16.gmra.mxu0 %v871
        %v966 = vpop.f32.mrf.mxu0
        %v967 = vadd.f32 0.0, %v966
        %v968 = vpop.f32.mrf.mxu0
        %v969 = vpop.f32.mrf.mxu0
        %v970 = vadd.f32 0.0, %v969
        %v971 = vpop.f32.mrf.mxu0
        %972 = vdwg.mxu0
        %v973 = vadd.f32 %v770, %v911
        %v974 = vadd.f32 %v773, %v914
        %v975 = vadd.f32 %v778, %v919
        %v976 = vadd.f32 %v781, %v922
        %v977 = vadd.f32 %v786, %v927
        %v978 = vadd.f32 %v789, %v930
        %v979 = vadd.f32 %v794, %v935
        %v980 = vadd.f32 %v797, %v938
        %v981 = vadd.f32 %v802, %v943
        %v982 = vadd.f32 %v805, %v946
        %v983 = vadd.f32 %v810, %v951
        %v984 = vadd.f32 %v813, %v954
        %v985 = vadd.f32 %v818, %v959
        %v986 = vadd.f32 %v821, %v962
        %v987 = vadd.f32 %v826, %v967
        %v988 = vadd.f32 %v829, %v970
        %v989 = vld [vmem:[%s280] sm:$0x1]
        %v991 = vlaneseq
        %v992 = vshrl.u32 %v991, 7
        %v993 = vsub.s32 0, %v992
        %v994 = vrot.slane %v989, %v993
        %v996 = vadd.f32 %v973, %v994
        %v997 = vadd.f32 %v974, %v994
        %v998 = vadd.f32 %v975, %v994
        %v999 = vadd.f32 %v976, %v994
        %v1000 = vadd.f32 %v977, %v994
        %v1001 = vadd.f32 %v978, %v994
        %v1002 = vadd.f32 %v979, %v994
        %v1003 = vadd.f32 %v980, %v994
        %v1004 = vadd.f32 %v981, %v994
        %v1005 = vadd.f32 %v982, %v994
        %v1006 = vadd.f32 %v983, %v994
        %v1007 = vadd.f32 %v984, %v994
        %v1008 = vadd.f32 %v985, %v994
        %v1009 = vadd.f32 %v986, %v994
        %v1010 = vadd.f32 %v987, %v994
        %v1011 = vadd.f32 %v988, %v994
        %vm1012 = vcmask 130048
        %1013 = vst.msk [vmem:[%s257] sm:$0xff] %vm1012, %v996
        %1014 = vst.msk [vmem:[%s257 + $0x8] sm:$0xff] %vm1012, %v997
        %1015 = vst.msk [vmem:[%s257 + $0x10] sm:$0xff] %vm1012, %v998
        %1016 = vst.msk [vmem:[%s257 + $0x18] sm:$0xff] %vm1012, %v999
        %1017 = vst.msk [vmem:[%s257 + $0x20] sm:$0xff] %vm1012, %v1000
        %1018 = vst.msk [vmem:[%s257 + $0x28] sm:$0xff] %vm1012, %v1001
        %1019 = vst.msk [vmem:[%s257 + $0x30] sm:$0xff] %vm1012, %v1002
        %1020 = vst.msk [vmem:[%s257 + $0x38] sm:$0xff] %vm1012, %v1003
        %1021 = vst.msk [vmem:[%s257 + $0x40] sm:$0xff] %vm1012, %v1004
        %1022 = vst.msk [vmem:[%s257 + $0x48] sm:$0xff] %vm1012, %v1005
        %1023 = vst.msk [vmem:[%s257 + $0x50] sm:$0xff] %vm1012, %v1006
        %1024 = vst.msk [vmem:[%s257 + $0x58] sm:$0xff] %vm1012, %v1007
        %1025 = vst.msk [vmem:[%s257 + $0x60] sm:$0xff] %vm1012, %v1008
        %1026 = vst.msk [vmem:[%s257 + $0x68] sm:$0xff] %vm1012, %v1009
        %1027 = vst.msk [vmem:[%s257 + $0x70] sm:$0xff] %vm1012, %v1010
        %1028 = vst.msk [vmem:[%s257 + $0x78] sm:$0xff] %vm1012, %v1011
        %v1029 = vsel %vm1012, %v996, 0.0
        %v1030 = vsel %vm1012, %v997, 0.0
        %v1031 = vadd.f32 %v1029, %v1030
        %v1032 = vsel %vm1012, %v998, 0.0
        %v1033 = vadd.f32 %v1031, %v1032
        %v1034 = vsel %vm1012, %v999, 0.0
        %v1035 = vadd.f32 %v1033, %v1034
        %v1036 = vsel %vm1012, %v1000, 0.0
        %v1037 = vadd.f32 %v1035, %v1036
        %v1038 = vsel %vm1012, %v1001, 0.0
        %v1039 = vadd.f32 %v1037, %v1038
        %v1040 = vsel %vm1012, %v1002, 0.0
        %v1041 = vadd.f32 %v1039, %v1040
        %v1042 = vsel %vm1012, %v1003, 0.0
        %v1043 = vadd.f32 %v1041, %v1042
        %v1044 = vsel %vm1012, %v1004, 0.0
        %v1045 = vadd.f32 %v1043, %v1044
        %v1046 = vsel %vm1012, %v1005, 0.0
        %v1047 = vadd.f32 %v1045, %v1046
        %v1048 = vsel %vm1012, %v1006, 0.0
        %v1049 = vadd.f32 %v1047, %v1048
        %v1050 = vsel %vm1012, %v1007, 0.0
        %v1051 = vadd.f32 %v1049, %v1050
        %v1052 = vsel %vm1012, %v1008, 0.0
        %v1053 = vadd.f32 %v1051, %v1052
        %v1054 = vsel %vm1012, %v1009, 0.0
        %v1055 = vadd.f32 %v1053, %v1054
        %v1056 = vsel %vm1012, %v1010, 0.0
        %v1057 = vadd.f32 %v1055, %v1056
        %v1058 = vsel %vm1012, %v1011, 0.0
        %v1059 = vadd.f32 %v1057, %v1058
        %v1060 = vrot.slane %v1059, 4
        %v1061 = vadd.f32 %v1059, %v1060
        %v1062 = vrot.slane %v1061, 2
        %v1063 = vadd.f32 %v1061, %v1062
        %v1064 = vrot.slane %v1063, 1
        %v1065 = vadd.f32 %v1063, %v1064
        %v1066 = vmul.f32 %v996, %v996
        %v1067 = vmul.f32 %v997, %v997
        %v1068 = vmul.f32 %v998, %v998
        %v1069 = vmul.f32 %v999, %v999
        %v1070 = vmul.f32 %v1000, %v1000
        %v1071 = vmul.f32 %v1001, %v1001
        %v1072 = vmul.f32 %v1002, %v1002
        %v1073 = vmul.f32 %v1003, %v1003
        %v1074 = vmul.f32 %v1004, %v1004
        %v1075 = vmul.f32 %v1005, %v1005
        %v1076 = vmul.f32 %v1006, %v1006
        %v1077 = vmul.f32 %v1007, %v1007
        %v1078 = vmul.f32 %v1008, %v1008
        %v1079 = vmul.f32 %v1009, %v1009
        %v1080 = vmul.f32 %v1010, %v1010
        %v1081 = vmul.f32 %v1011, %v1011
        %v1082 = vsel %vm1012, %v1066, 0.0
        %v1083 = vsel %vm1012, %v1067, 0.0
        %v1084 = vadd.f32 %v1082, %v1083
        %v1085 = vsel %vm1012, %v1068, 0.0
        %v1086 = vadd.f32 %v1084, %v1085
        %v1087 = vsel %vm1012, %v1069, 0.0
        %v1088 = vadd.f32 %v1086, %v1087
        %v1089 = vsel %vm1012, %v1070, 0.0
        %v1090 = vadd.f32 %v1088, %v1089
        %v1091 = vsel %vm1012, %v1071, 0.0
        %v1092 = vadd.f32 %v1090, %v1091
        %v1093 = vsel %vm1012, %v1072, 0.0
        %v1094 = vadd.f32 %v1092, %v1093
        %v1095 = vsel %vm1012, %v1073, 0.0
        %v1096 = vadd.f32 %v1094, %v1095
        %v1097 = vsel %vm1012, %v1074, 0.0
        %v1098 = vadd.f32 %v1096, %v1097
        %v1099 = vsel %vm1012, %v1075, 0.0
        %v1100 = vadd.f32 %v1098, %v1099
        %v1101 = vsel %vm1012, %v1076, 0.0
        %v1102 = vadd.f32 %v1100, %v1101
        %v1103 = vsel %vm1012, %v1077, 0.0
        %v1104 = vadd.f32 %v1102, %v1103
        %v1105 = vsel %vm1012, %v1078, 0.0
        %v1106 = vadd.f32 %v1104, %v1105
        %v1107 = vsel %vm1012, %v1079, 0.0
        %v1108 = vadd.f32 %v1106, %v1107
        %v1109 = vsel %vm1012, %v1080, 0.0
        %v1110 = vadd.f32 %v1108, %v1109
        %v1111 = vsel %vm1012, %v1081, 0.0
        %v1112 = vadd.f32 %v1110, %v1111
        %v1113 = vrot.slane %v1112, 4
        %v1114 = vadd.f32 %v1112, %v1113
        %v1115 = vrot.slane %v1114, 2
        %v1116 = vadd.f32 %v1114, %v1115
        %v1117 = vrot.slane %v1116, 1
        %v1118 = vadd.f32 %v1116, %v1117
        %vm1119 = vcmask 1040384
        %v1120 = vsel %vm1119, %v1065, %v1118
        %vm1121 = vcmask 123904
        %1122 = vst.msk [vmem:[%s264] sm:$0x3] %vm1121, %v1120
        %s1123 = sand.u32 %s135, 1
        %s1124 = scalar_lea.sflag [#allocation3], %s1123
        %s1125 = sand.u32 %s135, 1
        %s1126 = smul.addr %s1125, 128
        %s1127 = scalar_lea.vmem [#allocation2], %s1126
        %s1128 = sand.u32 %s167, 1
        %s1129 = scalar_lea.sflag [#allocation5], %s1128
        %s1130 = sand.u32 %s167, 1
        %s1131 = smul.addr %s1130, 2
        %s1132 = scalar_lea.vmem [#allocation4], %s1131
        // Predicated region
        $region33: #{tpu_custom_call.1} parent=31 // pred_check
          %p1133 = pneg %p145
        $region34: #{tpu_custom_call.1} parent=31 // pred_check_branch
          %1135 = sbr.rel (%p1133) target = $region36
        $region35: #{tpu_custom_call.1} parent=31 // pred_region
          %s1136 = smul.u32 8, %s28
          %s1138 = ssub.s32 2048, 2048
          %1139 = vsyncadd %s1124, %s1138
          %s1140 = smul.addr %s1136, 2
          %s1141 = sadd.s32 %s29, %s1140
          %s1142 = smul.addr %s27, 32
          %s1143 = sadd.s32 %s1141, %s1142
          %s1144 = smul.addr %s1143, 128
          %s1145 = scalar_lea.hbm %s3, %s1144
          %s1146 = sshll.u32 %s1127, 4
          %s1147 = int_to_ptr.vmem [resolvable:$true] %s1146
          %1152 = dma.vmem_to_hbm [thread:$0]  %s1147, 2048, %s1145, %s1124, 128, 128, 8
        $region36: #{tpu_custom_call.1} parent=31 // pred_fallthru
          _
        // Predicated region
        $region37: #{tpu_custom_call.1} parent=31 // pred_check
          %p1153 = pneg %p177
        $region38: #{tpu_custom_call.1} parent=31 // pred_check_branch
          %1155 = sbr.rel (%p1153) target = $region40
        $region39: #{tpu_custom_call.1} parent=31 // pred_region
          %s1156 = smul.u32 %s27, 2
          %s1157 = sadd.s32 %s1156, %s28
          %s1159 = ssub.s32 32, 32
          %1160 = vsyncadd %s1129, %s1159
          %s1161 = sadd.s32 %s29, %s1157
          %s1162 = smul.addr %s1161, 32
          %s1163 = scalar_lea.hbm %s4, %s1162
          %s1165 = sshll.u32 %s1132, 4
          %s1166 = int_to_ptr.vmem [resolvable:$true] %s1165
          %1168 = dma.vmem_to_hbm [thread:$0]  %s1166, 32, %s1163, %s1129
        $region40: #{tpu_custom_call.1} parent=31 // pred_fallthru
          _
      $region32: #{tpu_custom_call.1} parent=5 // pred_fallthru
        _
      %p1169 = scmp.le.s32.totalorder 2, %s17
      // Predicated region
      $region41: #{tpu_custom_call.1} parent=5 // pred_check
        %p1170 = pneg %p1169
      $region42: #{tpu_custom_call.1} parent=5 // pred_check_branch
        %1172 = sbr.rel (%p1170) target = $region44
      $region43: #{tpu_custom_call.1} parent=5 // pred_region
        %s1173 = ssub.s32 %s17, 2
        // Predicated region
        $region45: #{tpu_custom_call.1} parent=43 // pred_check
          %p1174 = pneg %p151
        $region46: #{tpu_custom_call.1} parent=43 // pred_check_branch
          %1176 = sbr.rel (%p1174) target = $region48
        $region47: #{tpu_custom_call.1} parent=43 // pred_region
          %s1177 = sand.u32 %s136, 1
          %s1178 = scalar_lea.sflag [#allocation3], %s1177
          %s1179 = sand.u32 %s136, 1
          %s1180 = smul.addr %s1179, 128
          %s1181 = scalar_lea.vmem [#allocation2], %s1180
          %1182 = dma.done %s1178, 2048
        $region48: #{tpu_custom_call.1} parent=43 // pred_fallthru
          _
        // Predicated region
        $region49: #{tpu_custom_call.1} parent=43 // pred_check
          %p1183 = pneg %p183
        $region50: #{tpu_custom_call.1} parent=43 // pred_check_branch
          %1185 = sbr.rel (%p1183) target = $region52
        $region51: #{tpu_custom_call.1} parent=43 // pred_region
          %s1186 = sand.u32 %s168, 1
          %s1187 = scalar_lea.sflag [#allocation5], %s1186
          %s1188 = sand.u32 %s168, 1
          %s1189 = smul.addr %s1188, 2
          %s1190 = scalar_lea.vmem [#allocation4], %s1189
          %1191 = dma.done %s1187, 32
        $region52: #{tpu_custom_call.1} parent=43 // pred_fallthru
          _
      $region44: #{tpu_custom_call.1} parent=5 // pred_fallthru
        _
    $region6: #{tpu_custom_call.1} parent=1 // loop_footer
      %s21 = sadd.s32 1, %s17
    $region7: #{tpu_custom_call.1} parent=1 // loop_footer_branch
      %16 = sbr.rel target = $region3
    $region8: #{tpu_custom_call.1} parent=1 // loop_exit
      _
    %1192 = vsyncpa [#allocation3], 1
    %s1193 = scalar_lea.sflag [#allocation3], 1
    %1194 = vsyncpa %s1193, 1
    %1195 = vsyncpa [#allocation5], 1
    %s1196 = scalar_lea.sflag [#allocation5], 1
    %1197 = vsyncpa %s1196, 1

</llo_original>
